<compile_context>
chip_gen: v7x
topology: tpu7x:2x2x1
jax: 0.10.0
libtpu: 0.0.40
codegen_flags: <defaults>
</compile_context>

<pallas_src>
import functools
import numpy as np

import jax
import jax.numpy as jnp
from jax.experimental import pallas as pl
from jax.experimental.pallas import tpu as pltpu


def _gaussian_1d(ksize: int, sigma: float) -> jnp.ndarray:
    """Normalized 1-D Gaussian taps (ksize,), f32. outer(g, g) sums to 1."""
    ax = np.arange(ksize, dtype=np.float64) - (ksize - 1) / 2.0
    g = np.exp(-(ax ** 2) / (2.0 * sigma ** 2))
    g = g / g.sum()
    return jnp.asarray(g, dtype=jnp.float32)


def _cn_kernel(k1_ref, c50_ref, x_ref, y_ref, o_ref, acch_ref, accv_ref,
               *, ksize, H, W):
    """(Nb*C, H*W) block: out = x / (c50[row] + separable_gaussian_blur(y)).

    Rows are (image, channel) pairs; the lane axis is the flattened H*W plane.
    Column / row shifts of the blur become lane rotations + boundary masks.
    """
    pad = ksize // 2
    HW = H * W

    # Lane-position helpers (computed once; vary only along the lane dim).
    idx = jax.lax.broadcasted_iota(jnp.int32, (1, HW), 1)
    if W & (W - 1) == 0:                      # power-of-two width -> bit mask
        col = jnp.bitwise_and(idx, W - 1)
    else:
        col = jax.lax.rem(idx, W)

    yv = y_ref[...].astype(jnp.float32)

    # ---- horizontal (within-row) pass, accumulated in VMEM scratch --------
    # Centre tap needs no shift and no mask.
    acch_ref[...] = k1_ref[pad] * yv
    for t in range(ksize):                    # static, unrolled (K-1 taps)
        d = t - pad
        if d == 0:
            continue
        shifted = pltpu.roll(yv, (-d) % HW, axis=1)   # lane rotate (XLU slot)
        cd = col + d
        valid = jnp.logical_and(cd >= 0, cd < W)      # don't cross row ends
        acch_ref[...] += k1_ref[t] * jnp.where(valid, shifted, 0.0)

    acch = acch_ref[...]

    # ---- vertical (across-row) pass: shift by whole rows (d*W lanes) ------
    # Fold c50 in so the accumulator directly becomes the denominator.
    accv_ref[...] = c50_ref[...] + k1_ref[pad] * acch
    for t in range(ksize):                    # static, unrolled (K-1 taps)
        d = t - pad
        if d == 0:
            continue
        shifted = pltpu.roll(acch, (-d * W) % HW, axis=1)
        src = idx + d * W
        valid = jnp.logical_and(src >= 0, src < HW)   # don't cross image ends
        accv_ref[...] += k1_ref[t] * jnp.where(valid, shifted, 0.0)

    # ---- divisive normalization -------------------------------------------
    denom = accv_ref[...]
    inv = pl.reciprocal(denom, approx=True)   # EUP slot, VALU stays free
    inv = inv * (2.0 - denom * inv)           # Newton step 1
    inv = inv * (2.0 - denom * inv)           # Newton step 2 -> ~f32 exact
    o_ref[...] = (x_ref[...].astype(jnp.float32) * inv).astype(o_ref.dtype)


def mixed_contrast_normalization(x, y, k1d_bank, c50, ksize: int,
                                 *, batch_block=None):
    """x, y: (N, C, H, W).  k1d_bank: (C, K) per-channel 1-D Gaussian taps
    (the 2-D kernel of channel c is outer(k1d_bank[c], k1d_bank[c])).
    c50: (C,) per-channel semi-saturation constants.
    """
    N, C, H, W = x.shape
    assert y.shape == x.shape
    assert ksize % 2 == 1, "torch 'same' padding is reproduced only for odd ksize"
    HW = H * W

    Nb = N if batch_block is None else batch_block
    assert N % Nb == 0, "batch_block must divide N"
    Rb = Nb * C
    if Nb != N:
        # Blocks smaller than the full array must be sublane-aligned.
        assert Rb % 8 == 0, "need (batch_block * C) % 8 == 0 when tiling batch"

    # Per-row (row = image*C + channel) parameters, broadcast along lanes.
    k1 = jnp.asarray(k1d_bank, jnp.float32).T                        # (K, C)
    k1 = jnp.tile(k1[:, None, :], (1, Nb, 1)).reshape(ksize, Rb, 1)  # (K, Rb, 1)
    c50r = jnp.tile(jnp.asarray(c50, jnp.float32)[None, :],
                    (Nb, 1)).reshape(Rb, 1)                          # (Rb, 1)

    # Lane-dense view: (image, channel) -> sublanes, H*W -> lanes (>= 128).
    # Pure metadata reshape outside the kernel (contiguous row-major).
    x2 = x.reshape(N * C, HW)
    y2 = y.reshape(N * C, HW)

    elems = N * C * HW
    bytes_io = elems * (x.dtype.itemsize + y.dtype.itemsize + x.dtype.itemsize)
    cost = pl.CostEstimate(flops=(4 * ksize + 8) * elems,
                           transcendentals=elems,
                           bytes_accessed=int(bytes_io))

    kernel = functools.partial(_cn_kernel, ksize=ksize, H=H, W=W)
    out2 = pl.pallas_call(
        kernel,
        out_shape=jax.ShapeDtypeStruct((N * C, HW), x.dtype),
        grid=(N // Nb,),
        in_specs=[
            pl.BlockSpec((ksize, Rb, 1), lambda n: (0, 0, 0)),   # 1-D taps
            pl.BlockSpec((Rb, 1), lambda n: (0, 0)),             # c50
            pl.BlockSpec((Rb, HW), lambda n: (n, 0)),            # x
            pl.BlockSpec((Rb, HW), lambda n: (n, 0)),            # y
        ],
        out_specs=pl.BlockSpec((Rb, HW), lambda n: (n, 0)),
        scratch_shapes=[pltpu.VMEM((Rb, HW), jnp.float32),       # h-pass acc
                        pltpu.VMEM((Rb, HW), jnp.float32)],      # denominator
        compiler_params=pltpu.CompilerParams(
            dimension_semantics=("parallel",),
            vmem_limit_bytes=32 * 1024 * 1024),
        cost_estimate=cost,
    )(k1, c50r, x2, y2)
    return out2.reshape(N, C, H, W)


def _reference(x, y, k1d_bank, c50, ksize: int):
    """Pure-JAX reference: dense K*K depthwise conv (outer product) + divide."""
    pad = ksize // 2
    k2 = k1d_bank[:, :, None] * k1d_bank[:, None, :]          # (C, K, K)
    ypad = jnp.pad(y, ((0, 0), (0, 0), (pad, pad), (pad, pad)))
    H, W = x.shape[2], x.shape[3]
    acc = jnp.zeros_like(x)
    for di in range(ksize):
        for dj in range(ksize):
            acc = acc + (k2[None, :, di, dj, None, None]
                         * ypad[:, :, di:di + H, dj:dj + W])
    return x / (c50[None, :, None, None] + acc)


if __name__ == "__main__":
    key = jax.random.PRNGKey(0)
    kx, ky = jax.random.split(key)

    # 3 parvo channels + 1 magno channel, small spatial extent.
    N, C, H, W = 2, 4, 16, 16
    x = jax.random.uniform(kx, (N, C, H, W), dtype=jnp.float32)
    y = jax.random.uniform(ky, (N, C, H, W), dtype=jnp.float32)

    # Deterministic per-branch parameters (contrast_norm_p vs contrast_norm_m).
    KSIZE = 5
    g_p = _gaussian_1d(KSIZE, sigma=1.0)   # parvo branch
    g_m = _gaussian_1d(KSIZE, sigma=2.0)   # magno branch
    k1d_bank = jnp.stack([g_p if c < 3 else g_m for c in range(C)], axis=0)
    c50 = jnp.array([0.3 if c < 3 else 0.5 for c in range(C)], dtype=jnp.float32)

    out = mixed_contrast_normalization(x, y, k1d_bank, c50, KSIZE)
    out = jax.block_until_ready(out)

    ref = _reference(x, y, k1d_bank, c50, KSIZE)
    assert out.shape == (N, C, H, W)
    assert jnp.allclose(out, ref, atol=1e-5, rtol=1e-5), "mismatch vs reference"
    print("KERNEL_OK")
</pallas_src>

<mosaic_0001>
module attributes {stable_mosaic.version = 11 : i64} {
  func.func @_cn_kernel(%arg0: i32, %arg1: memref<5x8x1xf32, #tpu.memory_space<vmem>>, %arg2: memref<8x1xf32, #tpu.memory_space<vmem>>, %arg3: memref<8x256xf32, #tpu.memory_space<vmem>>, %arg4: memref<8x256xf32, #tpu.memory_space<vmem>>, %arg5: memref<8x256xf32, #tpu.memory_space<vmem>>, %arg6: memref<8x256xf32, #tpu.memory_space<vmem>>, %arg7: memref<8x256xf32, #tpu.memory_space<vmem>>) attributes {dimension_semantics = [#tpu.dimension_semantics<parallel>], iteration_bounds = array<i64: 1>, scalar_prefetch = 0 : i64, scratch_operands = 2 : i64, tpu.core_type = #tpu.core_type<tc>, window_params = [{pipeline_mode = #tpu.pipeline_mode<synchronous>, transform_indices = @transform_0, window_bounds = array<i64: 5, 8, 1>}, {pipeline_mode = #tpu.pipeline_mode<synchronous>, transform_indices = @transform_1, window_bounds = array<i64: 8, 1>}, {transform_indices = @transform_2, window_bounds = array<i64: 8, 256>}, {transform_indices = @transform_3, window_bounds = array<i64: 8, 256>}, {transform_indices = @transform_4, window_bounds = array<i64: 8, 256>}]} {
    %0 = tpu.iota {dimensions = array<i32: 1>} : vector<1x256xi32>
    %c15_i32 = arith.constant 15 : i32
    %1 = vector.broadcast %c15_i32 : i32 to vector<1x256xi32>
    %2 = arith.andi %0, %1 : vector<1x256xi32>
    %c0 = arith.constant 0 : index
    %c0_0 = arith.constant 0 : index
    %3 = vector.load %arg4[%c0, %c0_0] : memref<8x256xf32, #tpu.memory_space<vmem>>, vector<8x256xf32>
    %c2 = arith.constant 2 : index
    %c0_1 = arith.constant 0 : index
    %c0_2 = arith.constant 0 : index
    %4 = vector.load %arg1[%c2, %c0_1, %c0_2] : memref<5x8x1xf32, #tpu.memory_space<vmem>>, vector<1x8x1xf32>
    %5 = vector.shape_cast %4 : vector<1x8x1xf32> to vector<8x1xf32>
    %6 = vector.broadcast %5 : vector<8x1xf32> to vector<8x256xf32>
    %7 = arith.mulf %6, %3 : vector<8x256xf32>
    %c0_3 = arith.constant 0 : index
    %c0_4 = arith.constant 0 : index
    %8 = vector.load %arg6[%c0_3, %c0_4] : memref<8x256xf32, #tpu.memory_space<vmem>>, vector<8x256xf32>
    tpu.vector_store %arg6[%c0_3, %c0_4], %7 {strides = array<i32>} : memref<8x256xf32, #tpu.memory_space<vmem>>, vector<8x256xf32>,
    %c2_i32 = arith.constant 2 : i32
    %9 = tpu.dynamic_rotate %3 by %c2_i32 dim 1 : vector<8x256xf32>, i32 -> vector<8x256xf32>
    %c-2_i32 = arith.constant -2 : i32
    %10 = vector.broadcast %c-2_i32 : i32 to vector<1x256xi32>
    %11 = arith.addi %2, %10 : vector<1x256xi32>
    %c0_i32 = arith.constant 0 : i32
    %12 = vector.broadcast %c0_i32 : i32 to vector<1x256xi32>
    %13 = arith.cmpi sge, %11, %12 : vector<1x256xi32>
    %c16_i32 = arith.constant 16 : i32
    %14 = vector.broadcast %c16_i32 : i32 to vector<1x256xi32>
    %15 = arith.cmpi slt, %11, %14 : vector<1x256xi32>
    %16 = arith.andi %13, %15 : vector<1x256xi1>
    %c0_5 = arith.constant 0 : index
    %c0_6 = arith.constant 0 : index
    %17 = vector.load %arg6[%c0_5, %c0_6] : memref<8x256xf32, #tpu.memory_space<vmem>>, vector<8x256xf32>
    %c0_7 = arith.constant 0 : index
    %c0_8 = arith.constant 0 : index
    %c0_9 = arith.constant 0 : index
    %18 = vector.load %arg1[%c0_7, %c0_8, %c0_9] : memref<5x8x1xf32, #tpu.memory_space<vmem>>, vector<1x8x1xf32>
    %19 = vector.shape_cast %18 : vector<1x8x1xf32> to vector<8x1xf32>
    %cst = arith.constant 0.000000e+00 : f32
    %20 = vector.shape_cast %16 : vector<1x256xi1> to vector<1x256xi1>
    %21 = vector.broadcast %20 : vector<1x256xi1> to vector<8x256xi1>
    %22 = vector.broadcast %cst : f32 to vector<8x256xf32>
    %23 = arith.select %21, %9, %22 : vector<8x256xi1>, vector<8x256xf32>
    %24 = vector.broadcast %19 : vector<8x1xf32> to vector<8x256xf32>
    %25 = arith.mulf %24, %23 : vector<8x256xf32>
    %26 = arith.addf %17, %25 : vector<8x256xf32>
    %c0_10 = arith.constant 0 : index
    %c0_11 = arith.constant 0 : index
    %27 = vector.load %arg6[%c0_10, %c0_11] : memref<8x256xf32, #tpu.memory_space<vmem>>, vector<8x256xf32>
    tpu.vector_store %arg6[%c0_10, %c0_11], %26 {strides = array<i32>} : memref<8x256xf32, #tpu.memory_space<vmem>>, vector<8x256xf32>,
    %c1_i32 = arith.constant 1 : i32
    %28 = tpu.dynamic_rotate %3 by %c1_i32 dim 1 : vector<8x256xf32>, i32 -> vector<8x256xf32>
    %c-1_i32 = arith.constant -1 : i32
    %29 = vector.broadcast %c-1_i32 : i32 to vector<1x256xi32>
    %30 = arith.addi %2, %29 : vector<1x256xi32>
    %c0_i32_12 = arith.constant 0 : i32
    %31 = vector.broadcast %c0_i32_12 : i32 to vector<1x256xi32>
    %32 = arith.cmpi sge, %30, %31 : vector<1x256xi32>
    %c16_i32_13 = arith.constant 16 : i32
    %33 = vector.broadcast %c16_i32_13 : i32 to vector<1x256xi32>
    %34 = arith.cmpi slt, %30, %33 : vector<1x256xi32>
    %35 = arith.andi %32, %34 : vector<1x256xi1>
    %c0_14 = arith.constant 0 : index
    %c0_15 = arith.constant 0 : index
    %36 = vector.load %arg6[%c0_14, %c0_15] : memref<8x256xf32, #tpu.memory_space<vmem>>, vector<8x256xf32>
    %c1 = arith.constant 1 : index
    %c0_16 = arith.constant 0 : index
    %c0_17 = arith.constant 0 : index
    %37 = vector.load %arg1[%c1, %c0_16, %c0_17] : memref<5x8x1xf32, #tpu.memory_space<vmem>>, vector<1x8x1xf32>
    %38 = vector.shape_cast %37 : vector<1x8x1xf32> to vector<8x1xf32>
    %cst_18 = arith.constant 0.000000e+00 : f32
    %39 = vector.shape_cast %35 : vector<1x256xi1> to vector<1x256xi1>
    %40 = vector.broadcast %39 : vector<1x256xi1> to vector<8x256xi1>
    %41 = vector.broadcast %cst_18 : f32 to vector<8x256xf32>
    %42 = arith.select %40, %28, %41 : vector<8x256xi1>, vector<8x256xf32>
    %43 = vector.broadcast %38 : vector<8x1xf32> to vector<8x256xf32>
    %44 = arith.mulf %43, %42 : vector<8x256xf32>
    %45 = arith.addf %36, %44 : vector<8x256xf32>
    %c0_19 = arith.constant 0 : index
    %c0_20 = arith.constant 0 : index
    %46 = vector.load %arg6[%c0_19, %c0_20] : memref<8x256xf32, #tpu.memory_space<vmem>>, vector<8x256xf32>
    tpu.vector_store %arg6[%c0_19, %c0_20], %45 {strides = array<i32>} : memref<8x256xf32, #tpu.memory_space<vmem>>, vector<8x256xf32>,
    %c255_i32 = arith.constant 255 : i32
    %47 = tpu.dynamic_rotate %3 by %c255_i32 dim 1 : vector<8x256xf32>, i32 -> vector<8x256xf32>
    %c1_i32_21 = arith.constant 1 : i32
    %48 = vector.broadcast %c1_i32_21 : i32 to vector<1x256xi32>
    %49 = arith.addi %2, %48 : vector<1x256xi32>
    %c0_i32_22 = arith.constant 0 : i32
    %50 = vector.broadcast %c0_i32_22 : i32 to vector<1x256xi32>
    %51 = arith.cmpi sge, %49, %50 : vector<1x256xi32>
    %c16_i32_23 = arith.constant 16 : i32
    %52 = vector.broadcast %c16_i32_23 : i32 to vector<1x256xi32>
    %53 = arith.cmpi slt, %49, %52 : vector<1x256xi32>
    %54 = arith.andi %51, %53 : vector<1x256xi1>
    %c0_24 = arith.constant 0 : index
    %c0_25 = arith.constant 0 : index
    %55 = vector.load %arg6[%c0_24, %c0_25] : memref<8x256xf32, #tpu.memory_space<vmem>>, vector<8x256xf32>
    %c3 = arith.constant 3 : index
    %c0_26 = arith.constant 0 : index
    %c0_27 = arith.constant 0 : index
    %56 = vector.load %arg1[%c3, %c0_26, %c0_27] : memref<5x8x1xf32, #tpu.memory_space<vmem>>, vector<1x8x1xf32>
    %57 = vector.shape_cast %56 : vector<1x8x1xf32> to vector<8x1xf32>
    %cst_28 = arith.constant 0.000000e+00 : f32
    %58 = vector.shape_cast %54 : vector<1x256xi1> to vector<1x256xi1>
    %59 = vector.broadcast %58 : vector<1x256xi1> to vector<8x256xi1>
    %60 = vector.broadcast %cst_28 : f32 to vector<8x256xf32>
    %61 = arith.select %59, %47, %60 : vector<8x256xi1>, vector<8x256xf32>
    %62 = vector.broadcast %57 : vector<8x1xf32> to vector<8x256xf32>
    %63 = arith.mulf %62, %61 : vector<8x256xf32>
    %64 = arith.addf %55, %63 : vector<8x256xf32>
    %c0_29 = arith.constant 0 : index
    %c0_30 = arith.constant 0 : index
    %65 = vector.load %arg6[%c0_29, %c0_30] : memref<8x256xf32, #tpu.memory_space<vmem>>, vector<8x256xf32>
    tpu.vector_store %arg6[%c0_29, %c0_30], %64 {strides = array<i32>} : memref<8x256xf32, #tpu.memory_space<vmem>>, vector<8x256xf32>,
    %c254_i32 = arith.constant 254 : i32
    %66 = tpu.dynamic_rotate %3 by %c254_i32 dim 1 : vector<8x256xf32>, i32 -> vector<8x256xf32>
    %c2_i32_31 = arith.constant 2 : i32
    %67 = vector.broadcast %c2_i32_31 : i32 to vector<1x256xi32>
    %68 = arith.addi %2, %67 : vector<1x256xi32>
    %c0_i32_32 = arith.constant 0 : i32
    %69 = vector.broadcast %c0_i32_32 : i32 to vector<1x256xi32>
    %70 = arith.cmpi sge, %68, %69 : vector<1x256xi32>
    %c16_i32_33 = arith.constant 16 : i32
    %71 = vector.broadcast %c16_i32_33 : i32 to vector<1x256xi32>
    %72 = arith.cmpi slt, %68, %71 : vector<1x256xi32>
    %73 = arith.andi %70, %72 : vector<1x256xi1>
    %c0_34 = arith.constant 0 : index
    %c0_35 = arith.constant 0 : index
    %74 = vector.load %arg6[%c0_34, %c0_35] : memref<8x256xf32, #tpu.memory_space<vmem>>, vector<8x256xf32>
    %c4 = arith.constant 4 : index
    %c0_36 = arith.constant 0 : index
    %c0_37 = arith.constant 0 : index
    %75 = vector.load %arg1[%c4, %c0_36, %c0_37] : memref<5x8x1xf32, #tpu.memory_space<vmem>>, vector<1x8x1xf32>
    %76 = vector.shape_cast %75 : vector<1x8x1xf32> to vector<8x1xf32>
    %cst_38 = arith.constant 0.000000e+00 : f32
    %77 = vector.shape_cast %73 : vector<1x256xi1> to vector<1x256xi1>
    %78 = vector.broadcast %77 : vector<1x256xi1> to vector<8x256xi1>
    %79 = vector.broadcast %cst_38 : f32 to vector<8x256xf32>
    %80 = arith.select %78, %66, %79 : vector<8x256xi1>, vector<8x256xf32>
    %81 = vector.broadcast %76 : vector<8x1xf32> to vector<8x256xf32>
    %82 = arith.mulf %81, %80 : vector<8x256xf32>
    %83 = arith.addf %74, %82 : vector<8x256xf32>
    %c0_39 = arith.constant 0 : index
    %c0_40 = arith.constant 0 : index
    %84 = vector.load %arg6[%c0_39, %c0_40] : memref<8x256xf32, #tpu.memory_space<vmem>>, vector<8x256xf32>
    tpu.vector_store %arg6[%c0_39, %c0_40], %83 {strides = array<i32>} : memref<8x256xf32, #tpu.memory_space<vmem>>, vector<8x256xf32>,
    %c0_41 = arith.constant 0 : index
    %c0_42 = arith.constant 0 : index
    %85 = vector.load %arg6[%c0_41, %c0_42] : memref<8x256xf32, #tpu.memory_space<vmem>>, vector<8x256xf32>
    %c0_43 = arith.constant 0 : index
    %c0_44 = arith.constant 0 : index
    %86 = vector.load %arg2[%c0_43, %c0_44] : memref<8x1xf32, #tpu.memory_space<vmem>>, vector<8x1xf32>
    %c2_45 = arith.constant 2 : index
    %c0_46 = arith.constant 0 : index
    %c0_47 = arith.constant 0 : index
    %87 = vector.load %arg1[%c2_45, %c0_46, %c0_47] : memref<5x8x1xf32, #tpu.memory_space<vmem>>, vector<1x8x1xf32>
    %88 = vector.shape_cast %87 : vector<1x8x1xf32> to vector<8x1xf32>
    %89 = vector.broadcast %88 : vector<8x1xf32> to vector<8x256xf32>
    %90 = arith.mulf %89, %85 : vector<8x256xf32>
    %91 = vector.broadcast %86 : vector<8x1xf32> to vector<8x256xf32>
    %92 = arith.addf %91, %90 : vector<8x256xf32>
    %c0_48 = arith.constant 0 : index
    %c0_49 = arith.constant 0 : index
    %93 = vector.load %arg7[%c0_48, %c0_49] : memref<8x256xf32, #tpu.memory_space<vmem>>, vector<8x256xf32>
    tpu.vector_store %arg7[%c0_48, %c0_49], %92 {strides = array<i32>} : memref<8x256xf32, #tpu.memory_space<vmem>>, vector<8x256xf32>,
    %c32_i32 = arith.constant 32 : i32
    %94 = tpu.dynamic_rotate %85 by %c32_i32 dim 1 : vector<8x256xf32>, i32 -> vector<8x256xf32>
    %c-32_i32 = arith.constant -32 : i32
    %95 = vector.broadcast %c-32_i32 : i32 to vector<1x256xi32>
    %96 = arith.addi %0, %95 : vector<1x256xi32>
    %c0_i32_50 = arith.constant 0 : i32
    %97 = vector.broadcast %c0_i32_50 : i32 to vector<1x256xi32>
    %98 = arith.cmpi sge, %96, %97 : vector<1x256xi32>
    %c256_i32 = arith.constant 256 : i32
    %99 = vector.broadcast %c256_i32 : i32 to vector<1x256xi32>
    %100 = arith.cmpi slt, %96, %99 : vector<1x256xi32>
    %101 = arith.andi %98, %100 : vector<1x256xi1>
    %c0_51 = arith.constant 0 : index
    %c0_52 = arith.constant 0 : index
    %102 = vector.load %arg7[%c0_51, %c0_52] : memref<8x256xf32, #tpu.memory_space<vmem>>, vector<8x256xf32>
    %c0_53 = arith.constant 0 : index
    %c0_54 = arith.constant 0 : index
    %c0_55 = arith.constant 0 : index
    %103 = vector.load %arg1[%c0_53, %c0_54, %c0_55] : memref<5x8x1xf32, #tpu.memory_space<vmem>>, vector<1x8x1xf32>
    %104 = vector.shape_cast %103 : vector<1x8x1xf32> to vector<8x1xf32>
    %cst_56 = arith.constant 0.000000e+00 : f32
    %105 = vector.shape_cast %101 : vector<1x256xi1> to vector<1x256xi1>
    %106 = vector.broadcast %105 : vector<1x256xi1> to vector<8x256xi1>
    %107 = vector.broadcast %cst_56 : f32 to vector<8x256xf32>
    %108 = arith.select %106, %94, %107 : vector<8x256xi1>, vector<8x256xf32>
    %109 = vector.broadcast %104 : vector<8x1xf32> to vector<8x256xf32>
    %110 = arith.mulf %109, %108 : vector<8x256xf32>
    %111 = arith.addf %102, %110 : vector<8x256xf32>
    %c0_57 = arith.constant 0 : index
    %c0_58 = arith.constant 0 : index
    %112 = vector.load %arg7[%c0_57, %c0_58] : memref<8x256xf32, #tpu.memory_space<vmem>>, vector<8x256xf32>
    tpu.vector_store %arg7[%c0_57, %c0_58], %111 {strides = array<i32>} : memref<8x256xf32, #tpu.memory_space<vmem>>, vector<8x256xf32>,
    %c16_i32_59 = arith.constant 16 : i32
    %113 = tpu.dynamic_rotate %85 by %c16_i32_59 dim 1 : vector<8x256xf32>, i32 -> vector<8x256xf32>
    %c-16_i32 = arith.constant -16 : i32
    %114 = vector.broadcast %c-16_i32 : i32 to vector<1x256xi32>
    %115 = arith.addi %0, %114 : vector<1x256xi32>
    %c0_i32_60 = arith.constant 0 : i32
    %116 = vector.broadcast %c0_i32_60 : i32 to vector<1x256xi32>
    %117 = arith.cmpi sge, %115, %116 : vector<1x256xi32>
    %c256_i32_61 = arith.constant 256 : i32
    %118 = vector.broadcast %c256_i32_61 : i32 to vector<1x256xi32>
    %119 = arith.cmpi slt, %115, %118 : vector<1x256xi32>
    %120 = arith.andi %117, %119 : vector<1x256xi1>
    %c0_62 = arith.constant 0 : index
    %c0_63 = arith.constant 0 : index
    %121 = vector.load %arg7[%c0_62, %c0_63] : memref<8x256xf32, #tpu.memory_space<vmem>>, vector<8x256xf32>
    %c1_64 = arith.constant 1 : index
    %c0_65 = arith.constant 0 : index
    %c0_66 = arith.constant 0 : index
    %122 = vector.load %arg1[%c1_64, %c0_65, %c0_66] : memref<5x8x1xf32, #tpu.memory_space<vmem>>, vector<1x8x1xf32>
    %123 = vector.shape_cast %122 : vector<1x8x1xf32> to vector<8x1xf32>
    %cst_67 = arith.constant 0.000000e+00 : f32
    %124 = vector.shape_cast %120 : vector<1x256xi1> to vector<1x256xi1>
    %125 = vector.broadcast %124 : vector<1x256xi1> to vector<8x256xi1>
    %126 = vector.broadcast %cst_67 : f32 to vector<8x256xf32>
    %127 = arith.select %125, %113, %126 : vector<8x256xi1>, vector<8x256xf32>
    %128 = vector.broadcast %123 : vector<8x1xf32> to vector<8x256xf32>
    %129 = arith.mulf %128, %127 : vector<8x256xf32>
    %130 = arith.addf %121, %129 : vector<8x256xf32>
    %c0_68 = arith.constant 0 : index
    %c0_69 = arith.constant 0 : index
    %131 = vector.load %arg7[%c0_68, %c0_69] : memref<8x256xf32, #tpu.memory_space<vmem>>, vector<8x256xf32>
    tpu.vector_store %arg7[%c0_68, %c0_69], %130 {strides = array<i32>} : memref<8x256xf32, #tpu.memory_space<vmem>>, vector<8x256xf32>,
    %c240_i32 = arith.constant 240 : i32
    %132 = tpu.dynamic_rotate %85 by %c240_i32 dim 1 : vector<8x256xf32>, i32 -> vector<8x256xf32>
    %c16_i32_70 = arith.constant 16 : i32
    %133 = vector.broadcast %c16_i32_70 : i32 to vector<1x256xi32>
    %134 = arith.addi %0, %133 : vector<1x256xi32>
    %c0_i32_71 = arith.constant 0 : i32
    %135 = vector.broadcast %c0_i32_71 : i32 to vector<1x256xi32>
    %136 = arith.cmpi sge, %134, %135 : vector<1x256xi32>
    %c256_i32_72 = arith.constant 256 : i32
    %137 = vector.broadcast %c256_i32_72 : i32 to vector<1x256xi32>
    %138 = arith.cmpi slt, %134, %137 : vector<1x256xi32>
    %139 = arith.andi %136, %138 : vector<1x256xi1>
    %c0_73 = arith.constant 0 : index
    %c0_74 = arith.constant 0 : index
    %140 = vector.load %arg7[%c0_73, %c0_74] : memref<8x256xf32, #tpu.memory_space<vmem>>, vector<8x256xf32>
    %c3_75 = arith.constant 3 : index
    %c0_76 = arith.constant 0 : index
    %c0_77 = arith.constant 0 : index
    %141 = vector.load %arg1[%c3_75, %c0_76, %c0_77] : memref<5x8x1xf32, #tpu.memory_space<vmem>>, vector<1x8x1xf32>
    %142 = vector.shape_cast %141 : vector<1x8x1xf32> to vector<8x1xf32>
    %cst_78 = arith.constant 0.000000e+00 : f32
    %143 = vector.shape_cast %139 : vector<1x256xi1> to vector<1x256xi1>
    %144 = vector.broadcast %143 : vector<1x256xi1> to vector<8x256xi1>
    %145 = vector.broadcast %cst_78 : f32 to vector<8x256xf32>
    %146 = arith.select %144, %132, %145 : vector<8x256xi1>, vector<8x256xf32>
    %147 = vector.broadcast %142 : vector<8x1xf32> to vector<8x256xf32>
    %148 = arith.mulf %147, %146 : vector<8x256xf32>
    %149 = arith.addf %140, %148 : vector<8x256xf32>
    %c0_79 = arith.constant 0 : index
    %c0_80 = arith.constant 0 : index
    %150 = vector.load %arg7[%c0_79, %c0_80] : memref<8x256xf32, #tpu.memory_space<vmem>>, vector<8x256xf32>
    tpu.vector_store %arg7[%c0_79, %c0_80], %149 {strides = array<i32>} : memref<8x256xf32, #tpu.memory_space<vmem>>, vector<8x256xf32>,
    %c224_i32 = arith.constant 224 : i32
    %151 = tpu.dynamic_rotate %85 by %c224_i32 dim 1 : vector<8x256xf32>, i32 -> vector<8x256xf32>
    %c32_i32_81 = arith.constant 32 : i32
    %152 = vector.broadcast %c32_i32_81 : i32 to vector<1x256xi32>
    %153 = arith.addi %0, %152 : vector<1x256xi32>
    %c0_i32_82 = arith.constant 0 : i32
    %154 = vector.broadcast %c0_i32_82 : i32 to vector<1x256xi32>
    %155 = arith.cmpi sge, %153, %154 : vector<1x256xi32>
    %c256_i32_83 = arith.constant 256 : i32
    %156 = vector.broadcast %c256_i32_83 : i32 to vector<1x256xi32>
    %157 = arith.cmpi slt, %153, %156 : vector<1x256xi32>
    %158 = arith.andi %155, %157 : vector<1x256xi1>
    %c0_84 = arith.constant 0 : index
    %c0_85 = arith.constant 0 : index
    %159 = vector.load %arg7[%c0_84, %c0_85] : memref<8x256xf32, #tpu.memory_space<vmem>>, vector<8x256xf32>
    %c4_86 = arith.constant 4 : index
    %c0_87 = arith.constant 0 : index
    %c0_88 = arith.constant 0 : index
    %160 = vector.load %arg1[%c4_86, %c0_87, %c0_88] : memref<5x8x1xf32, #tpu.memory_space<vmem>>, vector<1x8x1xf32>
    %161 = vector.shape_cast %160 : vector<1x8x1xf32> to vector<8x1xf32>
    %cst_89 = arith.constant 0.000000e+00 : f32
    %162 = vector.shape_cast %158 : vector<1x256xi1> to vector<1x256xi1>
    %163 = vector.broadcast %162 : vector<1x256xi1> to vector<8x256xi1>
    %164 = vector.broadcast %cst_89 : f32 to vector<8x256xf32>
    %165 = arith.select %163, %151, %164 : vector<8x256xi1>, vector<8x256xf32>
    %166 = vector.broadcast %161 : vector<8x1xf32> to vector<8x256xf32>
    %167 = arith.mulf %166, %165 : vector<8x256xf32>
    %168 = arith.addf %159, %167 : vector<8x256xf32>
    %c0_90 = arith.constant 0 : index
    %c0_91 = arith.constant 0 : index
    %169 = vector.load %arg7[%c0_90, %c0_91] : memref<8x256xf32, #tpu.memory_space<vmem>>, vector<8x256xf32>
    tpu.vector_store %arg7[%c0_90, %c0_91], %168 {strides = array<i32>} : memref<8x256xf32, #tpu.memory_space<vmem>>, vector<8x256xf32>,
    %c0_92 = arith.constant 0 : index
    %c0_93 = arith.constant 0 : index
    %170 = vector.load %arg7[%c0_92, %c0_93] : memref<8x256xf32, #tpu.memory_space<vmem>>, vector<8x256xf32>
    %171 = tpu.reciprocal %170 {approx = true} : vector<8x256xf32> -> vector<8x256xf32>
    %172 = arith.mulf %170, %171 : vector<8x256xf32>
    %cst_94 = arith.constant 2.000000e+00 : f32
    %173 = vector.broadcast %cst_94 : f32 to vector<8x256xf32>
    %174 = arith.subf %173, %172 : vector<8x256xf32>
    %175 = arith.mulf %171, %174 : vector<8x256xf32>
    %176 = arith.mulf %170, %175 : vector<8x256xf32>
    %cst_95 = arith.constant 2.000000e+00 : f32
    %177 = vector.broadcast %cst_95 : f32 to vector<8x256xf32>
    %178 = arith.subf %177, %176 : vector<8x256xf32>
    %179 = arith.mulf %175, %178 : vector<8x256xf32>
    %c0_96 = arith.constant 0 : index
    %c0_97 = arith.constant 0 : index
    %180 = vector.load %arg3[%c0_96, %c0_97] : memref<8x256xf32, #tpu.memory_space<vmem>>, vector<8x256xf32>
    %181 = arith.mulf %180, %179 : vector<8x256xf32>
    %c0_98 = arith.constant 0 : index
    %c0_99 = arith.constant 0 : index
    %182 = vector.load %arg5[%c0_98, %c0_99] : memref<8x256xf32, #tpu.memory_space<vmem>>, vector<8x256xf32>
    tpu.vector_store %arg5[%c0_98, %c0_99], %181 {strides = array<i32>} : memref<8x256xf32, #tpu.memory_space<vmem>>, vector<8x256xf32>,
    return
  }
  func.func @transform_0(%arg0: i32) -> (i32, i32, i32) {
    %c0_i32 = arith.constant 0 : i32
    %c0_i32_0 = arith.constant 0 : i32
    %c0_i32_1 = arith.constant 0 : i32
    %c0_i32_2 = arith.constant 0 : i32
    return %c0_i32, %c0_i32_0, %c0_i32_1 : i32, i32, i32
  }
  func.func @transform_1(%arg0: i32) -> (i32, i32) {
    %c0_i32 = arith.constant 0 : i32
    %c0_i32_0 = arith.constant 0 : i32
    %c0_i32_1 = arith.constant 0 : i32
    return %c0_i32, %c0_i32_0 : i32, i32
  }
  func.func @transform_2(%arg0: i32) -> (i32, i32) {
    %c0_i32 = arith.constant 0 : i32
    %c0_i32_0 = arith.constant 0 : i32
    return %arg0, %c0_i32 : i32, i32
  }
  func.func @transform_3(%arg0: i32) -> (i32, i32) {
    %c0_i32 = arith.constant 0 : i32
    %c0_i32_0 = arith.constant 0 : i32
    return %arg0, %c0_i32 : i32, i32
  }
  func.func @transform_4(%arg0: i32) -> (i32, i32) {
    %c0_i32 = arith.constant 0 : i32
    %c0_i32_0 = arith.constant 0 : i32
    return %arg0, %c0_i32 : i32, i32
  }
}

</mosaic_0001>

<llo_original>
// kernel: tpu_custom_call.1
$region0: #{tpu_custom_call.1}
  #allocation0 [shape = 'u32[]', space=smem, size = 0x4, offset = 0x4, fixed_abs, tag = 'smem constant byte address 0x4 - core index']
  #allocation1 [shape = 'u32[144,128]{1,0:T(1,128)}', space=vmem, size = 0x12000, scoped, tag = 'internal scratch']
  #allocation2 [shape = 'f32[8,256]{1,0:T(8,128)}', space=vmem, size = 0x2000, scoped, tag = 'scratch operand']
  #allocation3 [shape = 'f32[8,256]{1,0:T(8,128)}', space=vmem, size = 0x2000, scoped, tag = 'scratch operand']
  %s0 = inlined_call_operand.vmem [shape: f32[5,8,1], index: 0, kind: input, shape index: {}]
  %s1 = inlined_call_operand.vmem [shape: f32[8,1], index: 1, kind: input, shape index: {}]
  %s2 = inlined_call_operand.vmem [shape: f32[8,256], index: 2, kind: input, shape index: {}]
  %s3 = inlined_call_operand.vmem [shape: f32[8,256], index: 3, kind: input, shape index: {}]
  %s4 = inlined_call_operand.hbm [shape: f32[8,256], index: 4, kind: output, shape index: {}]
  %s5 = sld [smem:[#allocation0]]
  $region26: #{tpu_custom_call.1} parent=0
    _
  %s7 = ssub.s32 1, %s5
  %s8 = scalar_select 0, %s7, %s5
  $region1: #{tpu_custom_call.1} parent=0
    #allocation4 [shape = 'u8[8192]{0}', space=vmem, size = 0x2000, scoped, tag = 'output window, operand 0, single buffered']
    #allocation5 [shape = 's32[1]{0}', space=sflag, size = 0x4, scoped, tag = 'scoped memory for tpu_custom_call.1']
    %9 = vsyncpa [#allocation5], 0
    // Predicated region
    $region2: #{tpu_custom_call.1} parent=1 // pred_check
      _
    $region3: #{tpu_custom_call.1} parent=1 // pred_check_branch
      %11 = sbr.rel (0) target = $region5
    $region4: #{tpu_custom_call.1} parent=1 // pred_region
      _
    $region5: #{tpu_custom_call.1} parent=1 // pred_fallthru
      _
    // Predicated region
    $region6: #{tpu_custom_call.1} parent=1 // pred_check
      _
    $region7: #{tpu_custom_call.1} parent=1 // pred_check_branch
      %13 = sbr.rel (0) target = $region9
    $region8: #{tpu_custom_call.1} parent=1 // pred_region
      _
    $region9: #{tpu_custom_call.1} parent=1 // pred_fallthru
      _
    // Predicated region
    $region10: #{tpu_custom_call.1} parent=1 // pred_check
      _
    $region11: #{tpu_custom_call.1} parent=1 // pred_check_branch
      %15 = sbr.rel (0) target = $region13
    $region12: #{tpu_custom_call.1} parent=1 // pred_region
      _
    $region13: #{tpu_custom_call.1} parent=1 // pred_fallthru
      _
    // Predicated region
    $region14: #{tpu_custom_call.1} parent=1 // pred_check
      _
    $region15: #{tpu_custom_call.1} parent=1 // pred_check_branch
      %17 = sbr.rel (0) target = $region17
    $region16: #{tpu_custom_call.1} parent=1 // pred_region
      _
    $region17: #{tpu_custom_call.1} parent=1 // pred_fallthru
      _
    %v18 = vlaneseq
    %v19 = vand.u32 %v18, 127
    %v20 = vadd.s32 %v19, 128
    %v21 = vand.u32 %v19, 15
    %v22 = vand.u32 %v20, 15
    %v23 = vld [vmem:[%s3] sm:$0xff]
    %v24 = vld [vmem:[%s3 + $0x8] sm:$0xff]
    %s25 = scalar_lea.vmem %s0, 16
    %v26 = vld [vmem:[%s25] sm:$0xff]
    %28 = vset.pattern.permute.xlu0 0
    %29 = vperm.xlu0 %28, %v26
    %v30 = vpop.permute.xlu0 %29
    %v32 = vmul.f32 %v30, %v23
    %v33 = vmul.f32 %v30, %v24
    %34 = vst [vmem:[#allocation2] sm:$0xff] %v32
    %35 = vst [vmem:[#allocation2 + $0x8] sm:$0xff] %v33
    %36 = vrot.lane.b32.xlu0 %v23, 2
    %v37 = vpop.permute.xlu0 %36
    %38 = vrot.lane.b32.xlu0 %v24, 2
    %v39 = vpop.permute.xlu0 %38
    %vm40 = vcmp.lt.s32.totalorder %v19, 2
    %v41 = vsel %vm40, %v37, %v39
    %v42 = vsel %vm40, %v39, %v37
    %v43 = vadd.s32 %v21, 4294967294
    %v44 = vadd.s32 %v22, 4294967294
    %vm45 = vcmp.ge.s32.totalorder %v43, 0
    %vm46 = vcmp.ge.s32.totalorder %v44, 0
    %vm47 = vcmp.lt.s32.totalorder %v43, 16
    %vm48 = vcmp.lt.s32.totalorder %v44, 16
    %vm49 = vmand %vm45, %vm47
    %vm50 = vmand %vm46, %vm48
    %v51 = vld [vmem:[#allocation2] sm:$0xff]
    %v52 = vld [vmem:[#allocation2 + $0x8] sm:$0xff]
    %v53 = vld [vmem:[%s0] sm:$0xff]
    %v54 = vsel %vm49, 1, 0
    %v55 = vsel %vm50, 1, 0
    %vm56 = vcmp.eq.s32.totalorder %v54, 1
    %vm57 = vcmp.eq.s32.totalorder %v55, 1
    %v58 = vsel %vm56, %v42, 0.0
    %v59 = vsel %vm57, %v41, 0.0
    %61 = vset.pattern.permute.xlu0 0
    %62 = vperm.xlu0 %61, %v53
    %v63 = vpop.permute.xlu0 %62
    %v65 = vmul.f32 %v63, %v58
    %v66 = vmul.f32 %v63, %v59
    %v67 = vadd.f32 %v51, %v65
    %v68 = vadd.f32 %v52, %v66
    %69 = vst [vmem:[#allocation2] sm:$0xff] %v67
    %70 = vst [vmem:[#allocation2 + $0x8] sm:$0xff] %v68
    %71 = vrot.lane.b32.xlu0 %v23, 1
    %v72 = vpop.permute.xlu0 %71
    %73 = vrot.lane.b32.xlu0 %v24, 1
    %v74 = vpop.permute.xlu0 %73
    %vm75 = vcmp.lt.s32.totalorder %v19, 1
    %v76 = vsel %vm75, %v72, %v74
    %v77 = vsel %vm75, %v74, %v72
    %v78 = vadd.s32 %v21, 4294967295
    %v79 = vadd.s32 %v22, 4294967295
    %vm80 = vcmp.ge.s32.totalorder %v78, 0
    %vm81 = vcmp.ge.s32.totalorder %v79, 0
    %vm82 = vcmp.lt.s32.totalorder %v78, 16
    %vm83 = vcmp.lt.s32.totalorder %v79, 16
    %vm84 = vmand %vm80, %vm82
    %vm85 = vmand %vm81, %vm83
    %v86 = vld [vmem:[#allocation2] sm:$0xff]
    %v87 = vld [vmem:[#allocation2 + $0x8] sm:$0xff]
    %s88 = scalar_lea.vmem %s0, 8
    %v89 = vld [vmem:[%s88] sm:$0xff]
    %v90 = vsel %vm84, 1, 0
    %v91 = vsel %vm85, 1, 0
    %vm92 = vcmp.eq.s32.totalorder %v90, 1
    %vm93 = vcmp.eq.s32.totalorder %v91, 1
    %v94 = vsel %vm92, %v77, 0.0
    %v95 = vsel %vm93, %v76, 0.0
    %97 = vset.pattern.permute.xlu0 0
    %98 = vperm.xlu0 %97, %v89
    %v99 = vpop.permute.xlu0 %98
    %v101 = vmul.f32 %v99, %v94
    %v102 = vmul.f32 %v99, %v95
    %v103 = vadd.f32 %v86, %v101
    %v104 = vadd.f32 %v87, %v102
    %105 = vst [vmem:[#allocation2] sm:$0xff] %v103
    %106 = vst [vmem:[#allocation2 + $0x8] sm:$0xff] %v104
    %107 = vrot.lane.b32.xlu0 %v23, 127
    %v108 = vpop.permute.xlu0 %107
    %109 = vrot.lane.b32.xlu0 %v24, 127
    %v110 = vpop.permute.xlu0 %109
    %vm111 = vcmp.lt.s32.totalorder %v19, 127
    %v112 = vsel %vm111, %v108, %v110
    %v113 = vsel %vm111, %v110, %v108
    %v114 = vadd.s32 %v21, 1
    %v115 = vadd.s32 %v22, 1
    %vm116 = vcmp.ge.s32.totalorder %v114, 0
    %vm117 = vcmp.ge.s32.totalorder %v115, 0
    %vm118 = vcmp.lt.s32.totalorder %v114, 16
    %vm119 = vcmp.lt.s32.totalorder %v115, 16
    %vm120 = vmand %vm116, %vm118
    %vm121 = vmand %vm117, %vm119
    %v122 = vld [vmem:[#allocation2] sm:$0xff]
    %v123 = vld [vmem:[#allocation2 + $0x8] sm:$0xff]
    %s124 = scalar_lea.vmem %s0, 24
    %v125 = vld [vmem:[%s124] sm:$0xff]
    %v126 = vsel %vm120, 1, 0
    %v127 = vsel %vm121, 1, 0
    %vm128 = vcmp.eq.s32.totalorder %v126, 1
    %vm129 = vcmp.eq.s32.totalorder %v127, 1
    %v130 = vsel %vm128, %v112, 0.0
    %v131 = vsel %vm129, %v113, 0.0
    %133 = vset.pattern.permute.xlu0 0
    %134 = vperm.xlu0 %133, %v125
    %v135 = vpop.permute.xlu0 %134
    %v137 = vmul.f32 %v135, %v130
    %v138 = vmul.f32 %v135, %v131
    %v139 = vadd.f32 %v122, %v137
    %v140 = vadd.f32 %v123, %v138
    %141 = vst [vmem:[#allocation2] sm:$0xff] %v139
    %142 = vst [vmem:[#allocation2 + $0x8] sm:$0xff] %v140
    %143 = vrot.lane.b32.xlu0 %v23, 126
    %v144 = vpop.permute.xlu0 %143
    %145 = vrot.lane.b32.xlu0 %v24, 126
    %v146 = vpop.permute.xlu0 %145
    %vm147 = vcmp.lt.s32.totalorder %v19, 126
    %v148 = vsel %vm147, %v144, %v146
    %v149 = vsel %vm147, %v146, %v144
    %v150 = vadd.s32 %v21, 2
    %v151 = vadd.s32 %v22, 2
    %vm152 = vcmp.ge.s32.totalorder %v150, 0
    %vm153 = vcmp.ge.s32.totalorder %v151, 0
    %vm154 = vcmp.lt.s32.totalorder %v150, 16
    %vm155 = vcmp.lt.s32.totalorder %v151, 16
    %vm156 = vmand %vm152, %vm154
    %vm157 = vmand %vm153, %vm155
    %v158 = vld [vmem:[#allocation2] sm:$0xff]
    %v159 = vld [vmem:[#allocation2 + $0x8] sm:$0xff]
    %s160 = scalar_lea.vmem %s0, 32
    %v161 = vld [vmem:[%s160] sm:$0xff]
    %v162 = vsel %vm156, 1, 0
    %v163 = vsel %vm157, 1, 0
    %vm164 = vcmp.eq.s32.totalorder %v162, 1
    %vm165 = vcmp.eq.s32.totalorder %v163, 1
    %v166 = vsel %vm164, %v148, 0.0
    %v167 = vsel %vm165, %v149, 0.0
    %169 = vset.pattern.permute.xlu0 0
    %170 = vperm.xlu0 %169, %v161
    %v171 = vpop.permute.xlu0 %170
    %v173 = vmul.f32 %v171, %v166
    %v174 = vmul.f32 %v171, %v167
    %v175 = vadd.f32 %v158, %v173
    %v176 = vadd.f32 %v159, %v174
    %177 = vst [vmem:[#allocation2] sm:$0xff] %v175
    %178 = vst [vmem:[#allocation2 + $0x8] sm:$0xff] %v176
    %v179 = vld [vmem:[#allocation2] sm:$0xff]
    %v180 = vld [vmem:[#allocation2 + $0x8] sm:$0xff]
    %v181 = vld [vmem:[%s1] sm:$0xff]
    %v182 = vld [vmem:[%s25] sm:$0xff]
    %184 = vset.pattern.permute.xlu0 0
    %185 = vperm.xlu0 %184, %v182
    %v186 = vpop.permute.xlu0 %185
    %v188 = vmul.f32 %v186, %v179
    %v189 = vmul.f32 %v186, %v180
    %191 = vset.pattern.permute.xlu0 0
    %192 = vperm.xlu0 %191, %v181
    %v193 = vpop.permute.xlu0 %192
    %v195 = vadd.f32 %v193, %v188
    %v196 = vadd.f32 %v193, %v189
    %197 = vst [vmem:[#allocation3] sm:$0xff] %v195
    %198 = vst [vmem:[#allocation3 + $0x8] sm:$0xff] %v196
    %199 = vrot.lane.b32.xlu0 %v179, 32
    %v200 = vpop.permute.xlu0 %199
    %201 = vrot.lane.b32.xlu0 %v180, 32
    %v202 = vpop.permute.xlu0 %201
    %vm203 = vcmp.lt.s32.totalorder %v19, 32
    %v204 = vsel %vm203, %v200, %v202
    %v205 = vsel %vm203, %v202, %v200
    %v206 = vadd.s32 %v19, 4294967264
    %v207 = vadd.s32 %v20, 4294967264
    %vm208 = vcmp.ge.s32.totalorder %v206, 0
    %vm209 = vcmp.ge.s32.totalorder %v207, 0
    %vm210 = vcmp.lt.s32.totalorder %v206, 256
    %vm211 = vcmp.lt.s32.totalorder %v207, 256
    %vm212 = vmand %vm208, %vm210
    %vm213 = vmand %vm209, %vm211
    %v214 = vld [vmem:[#allocation3] sm:$0xff]
    %v215 = vld [vmem:[#allocation3 + $0x8] sm:$0xff]
    %v216 = vld [vmem:[%s0] sm:$0xff]
    %v217 = vsel %vm212, 1, 0
    %v218 = vsel %vm213, 1, 0
    %vm219 = vcmp.eq.s32.totalorder %v217, 1
    %vm220 = vcmp.eq.s32.totalorder %v218, 1
    %v221 = vsel %vm219, %v205, 0.0
    %v222 = vsel %vm220, %v204, 0.0
    %224 = vset.pattern.permute.xlu0 0
    %225 = vperm.xlu0 %224, %v216
    %v226 = vpop.permute.xlu0 %225
    %v228 = vmul.f32 %v226, %v221
    %v229 = vmul.f32 %v226, %v222
    %v230 = vadd.f32 %v214, %v228
    %v231 = vadd.f32 %v215, %v229
    %232 = vst [vmem:[#allocation3] sm:$0xff] %v230
    %233 = vst [vmem:[#allocation3 + $0x8] sm:$0xff] %v231
    %234 = vrot.lane.b32.xlu0 %v179, 16
    %v235 = vpop.permute.xlu0 %234
    %236 = vrot.lane.b32.xlu0 %v180, 16
    %v237 = vpop.permute.xlu0 %236
    %vm238 = vcmp.lt.s32.totalorder %v19, 16
    %v239 = vsel %vm238, %v235, %v237
    %v240 = vsel %vm238, %v237, %v235
    %v241 = vadd.s32 %v19, 4294967280
    %v242 = vadd.s32 %v20, 4294967280
    %vm243 = vcmp.ge.s32.totalorder %v241, 0
    %vm244 = vcmp.ge.s32.totalorder %v242, 0
    %vm245 = vcmp.lt.s32.totalorder %v241, 256
    %vm246 = vcmp.lt.s32.totalorder %v242, 256
    %vm247 = vmand %vm243, %vm245
    %vm248 = vmand %vm244, %vm246
    %v249 = vld [vmem:[#allocation3] sm:$0xff]
    %v250 = vld [vmem:[#allocation3 + $0x8] sm:$0xff]
    %v251 = vld [vmem:[%s88] sm:$0xff]
    %v252 = vsel %vm247, 1, 0
    %v253 = vsel %vm248, 1, 0
    %vm254 = vcmp.eq.s32.totalorder %v252, 1
    %vm255 = vcmp.eq.s32.totalorder %v253, 1
    %v256 = vsel %vm254, %v240, 0.0
    %v257 = vsel %vm255, %v239, 0.0
    %259 = vset.pattern.permute.xlu0 0
    %260 = vperm.xlu0 %259, %v251
    %v261 = vpop.permute.xlu0 %260
    %v263 = vmul.f32 %v261, %v256
    %v264 = vmul.f32 %v261, %v257
    %v265 = vadd.f32 %v249, %v263
    %v266 = vadd.f32 %v250, %v264
    %267 = vst [vmem:[#allocation3] sm:$0xff] %v265
    %268 = vst [vmem:[#allocation3 + $0x8] sm:$0xff] %v266
    %269 = vrot.lane.b32.xlu0 %v179, 112
    %v270 = vpop.permute.xlu0 %269
    %271 = vrot.lane.b32.xlu0 %v180, 112
    %v272 = vpop.permute.xlu0 %271
    %vm273 = vcmp.lt.s32.totalorder %v19, 112
    %v274 = vsel %vm273, %v270, %v272
    %v275 = vsel %vm273, %v272, %v270
    %v276 = vadd.s32 %v19, 16
    %v277 = vadd.s32 %v20, 16
    %vm278 = vcmp.ge.s32.totalorder %v276, 0
    %vm279 = vcmp.ge.s32.totalorder %v277, 0
    %vm280 = vcmp.lt.s32.totalorder %v276, 256
    %vm281 = vcmp.lt.s32.totalorder %v277, 256
    %vm282 = vmand %vm278, %vm280
    %vm283 = vmand %vm279, %vm281
    %v284 = vld [vmem:[#allocation3] sm:$0xff]
    %v285 = vld [vmem:[#allocation3 + $0x8] sm:$0xff]
    %v286 = vld [vmem:[%s124] sm:$0xff]
    %v287 = vsel %vm282, 1, 0
    %v288 = vsel %vm283, 1, 0
    %vm289 = vcmp.eq.s32.totalorder %v287, 1
    %vm290 = vcmp.eq.s32.totalorder %v288, 1
    %v291 = vsel %vm289, %v274, 0.0
    %v292 = vsel %vm290, %v275, 0.0
    %294 = vset.pattern.permute.xlu0 0
    %295 = vperm.xlu0 %294, %v286
    %v296 = vpop.permute.xlu0 %295
    %v298 = vmul.f32 %v296, %v291
    %v299 = vmul.f32 %v296, %v292
    %v300 = vadd.f32 %v284, %v298
    %v301 = vadd.f32 %v285, %v299
    %302 = vst [vmem:[#allocation3] sm:$0xff] %v300
    %303 = vst [vmem:[#allocation3 + $0x8] sm:$0xff] %v301
    %304 = vrot.lane.b32.xlu0 %v179, 96
    %v305 = vpop.permute.xlu0 %304
    %306 = vrot.lane.b32.xlu0 %v180, 96
    %v307 = vpop.permute.xlu0 %306
    %vm308 = vcmp.lt.s32.totalorder %v19, 96
    %v309 = vsel %vm308, %v305, %v307
    %v310 = vsel %vm308, %v307, %v305
    %v311 = vadd.s32 %v19, 32
    %v312 = vadd.s32 %v20, 32
    %vm313 = vcmp.ge.s32.totalorder %v311, 0
    %vm314 = vcmp.ge.s32.totalorder %v312, 0
    %vm315 = vcmp.lt.s32.totalorder %v311, 256
    %vm316 = vcmp.lt.s32.totalorder %v312, 256
    %vm317 = vmand %vm313, %vm315
    %vm318 = vmand %vm314, %vm316
    %v319 = vld [vmem:[#allocation3] sm:$0xff]
    %v320 = vld [vmem:[#allocation3 + $0x8] sm:$0xff]
    %v321 = vld [vmem:[%s160] sm:$0xff]
    %v322 = vsel %vm317, 1, 0
    %v323 = vsel %vm318, 1, 0
    %vm324 = vcmp.eq.s32.totalorder %v322, 1
    %vm325 = vcmp.eq.s32.totalorder %v323, 1
    %v326 = vsel %vm324, %v309, 0.0
    %v327 = vsel %vm325, %v310, 0.0
    %329 = vset.pattern.permute.xlu0 0
    %330 = vperm.xlu0 %329, %v321
    %v331 = vpop.permute.xlu0 %330
    %v333 = vmul.f32 %v331, %v326
    %v334 = vmul.f32 %v331, %v327
    %v335 = vadd.f32 %v319, %v333
    %v336 = vadd.f32 %v320, %v334
    %337 = vst [vmem:[#allocation3] sm:$0xff] %v335
    %338 = vst [vmem:[#allocation3 + $0x8] sm:$0xff] %v336
    %v339 = vld [vmem:[#allocation3] sm:$0xff]
    %v340 = vld [vmem:[#allocation3 + $0x8] sm:$0xff]
    %v341 = vrcp.pop %v339
    %v342 = vrcp.pop %v340
    %v343 = vmul.f32 %v339, %v341
    %v344 = vmul.f32 %v340, %v342
    %v345 = vsub.f32 2.0, %v343
    %v346 = vsub.f32 2.0, %v344
    %v347 = vmul.f32 %v341, %v345
    %v348 = vmul.f32 %v342, %v346
    %v349 = vmul.f32 %v339, %v347
    %v350 = vmul.f32 %v340, %v348
    %v351 = vsub.f32 2.0, %v349
    %v352 = vsub.f32 2.0, %v350
    %v353 = vmul.f32 %v347, %v351
    %v354 = vmul.f32 %v348, %v352
    %v355 = vld [vmem:[%s2] sm:$0xff]
    %v356 = vld [vmem:[%s2 + $0x8] sm:$0xff]
    %v357 = vmul.f32 %v355, %v353
    %v358 = vmul.f32 %v356, %v354
    %359 = vst [vmem:[#allocation4] sm:$0xff] %v357
    %360 = vst [vmem:[#allocation4 + $0x8] sm:$0xff] %v358
    // Predicated region
    $region18: #{tpu_custom_call.1} parent=1 // pred_check
      _
    $region19: #{tpu_custom_call.1} parent=1 // pred_check_branch
      %362 = sbr.rel (0) target = $region21
    $region20: #{tpu_custom_call.1} parent=1 // pred_region
      %s364 = ssub.s32 256, 256
      %365 = vsyncadd [#allocation5], %s364
      %s367 = sshll.u32 [#allocation4], 4
      %s368 = int_to_ptr.vmem [resolvable:$true] %s367
      %370 = dma.vmem_to_hbm [thread:$0]  %s368, 256, %s4, [#allocation5]
    $region21: #{tpu_custom_call.1} parent=1 // pred_fallthru
      _
    // Predicated region
    $region22: #{tpu_custom_call.1} parent=1 // pred_check
      _
    $region23: #{tpu_custom_call.1} parent=1 // pred_check_branch
      %372 = sbr.rel (0) target = $region25
    $region24: #{tpu_custom_call.1} parent=1 // pred_region
      %373 = dma.done [#allocation5], 256
    $region25: #{tpu_custom_call.1} parent=1 // pred_fallthru
      _
    %374 = vsyncpa [#allocation5], 1

</llo_original>
